<compile_context>
chip_gen: v7x
topology: tpu7x:2x2x1
jax: 0.10.0
libtpu: 0.0.40
codegen_flags: <defaults>
</compile_context>

<pallas_src>
import functools

import jax
import jax.numpy as jnp
from jax.experimental import pallas as pl
from jax.experimental.pallas import tpu as pltpu


def _round_up(v, m):
    return ((v + m - 1) // m) * m


def _cdiv(a, b):
    return (a + b - 1) // b


def _vmem_budget_bytes():
    """Generation-aware scoped-VMEM budget with headroom for compiler scratch."""
    try:
        cap = int(pltpu.get_tpu_info().vmem_capacity_bytes)
    except Exception:
        cap = 64 * 1024 * 1024  # conservative default: v7x per-core VMEM
    # ~75% of physical (48 MiB on v7x, 96 MiB on v5e/v6e).
    return min(cap * 3 // 4, 96 * 1024 * 1024)


def _linear_fullk_kernel(x_ref, w_ref, b_ref, o_ref):
    # x: [tb, K], w: [K, tn], b: [1, tn], o: [tb, tn].  Single MXU dot,
    # bias add, direct lane-dense store — no accumulator, no branches.
    o_ref[...] = (
        jnp.dot(x_ref[...], w_ref[...], preferred_element_type=jnp.float32)
        + b_ref[...]
    ).astype(o_ref.dtype)


def _linear_ktiled_kernel(x_ref, w_ref, b_ref, o_ref, acc_ref):
    # Fallback for very large K: classic accumulate-over-K with init/finalize.
    k = pl.program_id(2)

    @pl.when(k == 0)
    def _init():
        acc_ref[...] = jnp.zeros_like(acc_ref)

    acc_ref[...] += jnp.dot(
        x_ref[...], w_ref[...], preferred_element_type=jnp.float32
    )

    @pl.when(k == pl.num_programs(2) - 1)
    def _finalize():
        o_ref[...] = (acc_ref[...] + b_ref[...]).astype(o_ref.dtype)


@functools.partial(jax.jit, static_argnames=("use_pallas",))
def logistic_regression_forward(x, weight, bias, *, use_pallas=None):
    """LogisticRegression.forward: x @ weight.T + bias (logits; no sigmoid).

    x:      [batch, input_size]       float32
    weight: [output_size, input_size] float32 (PyTorch nn.Linear convention)
    bias:   [output_size]             float32
    """
    B, K = x.shape
    N = weight.shape[0]
    itemsize = 4  # float32

    if use_pallas is None:
        # Tiny problems: pallas_call launch/DMA overhead dominates; let XLA fuse.
        use_pallas = (B * K * N) >= (1 << 20)
    if not use_pallas:
        return x @ weight.T + bias

    budget = _vmem_budget_bytes()

    # Lane-dense output: pad only the (tiny) weight/bias along N to 128.
    N_pad = _round_up(N, 128)
    tn = N_pad if N_pad <= 512 else 128  # 128 always divides N_pad
    nn = N_pad // tn

    # Pre-transpose + N-pad the weight so the kernel contracts [M,K]x[K,N];
    # this is a negligible one-off on the small operand.
    w_t = jnp.pad(weight.T.astype(x.dtype), ((0, 0), (0, N_pad - N)))
    b_p = jnp.pad(bias.astype(x.dtype), (0, N_pad - N)).reshape(1, N_pad)

    # x is only copied if the batch is not 8-aligned (sublane minimum for f32).
    B8 = _round_up(B, 8)
    x_p = x if B8 == B else jnp.pad(x, ((0, B8 - B), (0, 0)))

    # ---------- Path 1: collapse the K axis (fits VMEM) ----------
    # Double-buffered weight/bias + double-buffered x/out tiles.
    fixed = 2 * K * tn * itemsize + 2 * tn * itemsize

    def fullk_bytes(tb):
        return fixed + 2 * tb * (K + tn) * itemsize

    if fullk_bytes(8) <= budget:
        # Largest batch tile the budget allows (amortizes per-step overhead
        # on the HBM-bandwidth-bound x stream), capped at 1024 rows.
        tb = (budget - fixed) // (2 * (K + tn) * itemsize)
        tb = max(8, min(1024, B8, (tb // 8) * 8))
        # Megacore (v7x): guarantee >= 2 parallel tiles when batch allows it.
        if nn == 1 and B8 >= 16:
            tb = min(tb, _round_up(_cdiv(B8, 2), 8))
        grid = (_cdiv(B8, tb), nn)

        out = pl.pallas_call(
            _linear_fullk_kernel,
            out_shape=jax.ShapeDtypeStruct((B8, N_pad), x.dtype),
            grid_spec=pltpu.PrefetchScalarGridSpec(
                num_scalar_prefetch=0,
                grid=grid,
                in_specs=[
                    # x tile: full K extent, streamed once over the batch.
                    pl.BlockSpec((tb, K), lambda i, j: (i, 0)),
                    # weight: block index independent of i -> for the common
                    # nn == 1 case it is DMA'd once and stays VMEM-resident.
                    pl.BlockSpec((K, tn), lambda i, j: (0, j)),
                    pl.BlockSpec((1, tn), lambda i, j: (0, j)),
                ],
                out_specs=pl.BlockSpec((tb, tn), lambda i, j: (i, j)),
            ),
            compiler_params=pltpu.CompilerParams(
                dimension_semantics=("parallel", "parallel"),
                vmem_limit_bytes=budget,
            ),
        )(x_p, w_t, b_p)
        return out[:B, :N]

    # ---------- Path 2: very large K -> tile the reduction ----------
    tk = 2048
    # Shrink tk until the minimal (tb=8) footprint fits the budget.
    while tk > 128 and (2 * tk * tn + 2 * 8 * tk + 3 * 8 * tn) * itemsize > budget:
        tk //= 2
    K_pad = _round_up(K, tk)
    # Zero-pad the contraction dim of BOTH operands so padded K columns
    # contribute exactly zero to the accumulation.
    x_k = jnp.pad(x_p, ((0, 0), (0, K_pad - K)))
    w_k = jnp.pad(w_t, ((0, K_pad - K), (0, 0)))

    fixed_k = (2 * tk * tn + 2 * tn) * itemsize
    tb = (budget - fixed_k) // ((2 * tk + 3 * tn) * itemsize)
    tb = max(8, min(1024, B8, (tb // 8) * 8))
    if nn == 1 and B8 >= 16:
        tb = min(tb, _round_up(_cdiv(B8, 2), 8))
    grid = (_cdiv(B8, tb), nn, K_pad // tk)

    out = pl.pallas_call(
        _linear_ktiled_kernel,
        out_shape=jax.ShapeDtypeStruct((B8, N_pad), x.dtype),
        grid_spec=pltpu.PrefetchScalarGridSpec(
            num_scalar_prefetch=0,
            grid=grid,
            in_specs=[
                pl.BlockSpec((tb, tk), lambda i, j, k: (i, k)),
                pl.BlockSpec((tk, tn), lambda i, j, k: (k, j)),
                pl.BlockSpec((1, tn), lambda i, j, k: (0, j)),
            ],
            out_specs=pl.BlockSpec((tb, tn), lambda i, j, k: (i, j)),
            scratch_shapes=[pltpu.VMEM((tb, tn), jnp.float32)],
        ),
        compiler_params=pltpu.CompilerParams(
            dimension_semantics=("parallel", "parallel", "arbitrary"),
            vmem_limit_bytes=budget,
        ),
    )(x_k, w_k, b_p)
    return out[:B, :N]


if __name__ == "__main__":
    key = jax.random.PRNGKey(0)
    k_x, k_w, k_b = jax.random.split(key, 3)

    batch = 8
    input_size = 32
    output_size = 4

    x = jax.random.normal(k_x, (batch, input_size), dtype=jnp.float32)
    # Deterministic init mimicking nn.Linear's uniform(-1/sqrt(in), 1/sqrt(in))
    bound = 1.0 / jnp.sqrt(jnp.float32(input_size))
    weight = jax.random.uniform(
        k_w, (output_size, input_size), dtype=jnp.float32,
        minval=-bound, maxval=bound)
    bias = jax.random.uniform(
        k_b, (output_size,), dtype=jnp.float32, minval=-bound, maxval=bound)

    ref = x @ weight.T + bias

    # Force the Pallas path so the kernel itself is exercised at this size.
    out = logistic_regression_forward(x, weight, bias, use_pallas=True)
    out = jax.block_until_ready(out)
    assert out.shape == (batch, output_size)
    assert jnp.allclose(out, ref, atol=1e-5, rtol=1e-5)

    # Auto mode falls back to fused XLA for this tiny problem; check it too.
    out_auto = jax.block_until_ready(logistic_regression_forward(x, weight, bias))
    assert jnp.allclose(out_auto, ref, atol=1e-5, rtol=1e-5)

    print("KERNEL_OK")
</pallas_src>

<mosaic_0001>
module attributes {stable_mosaic.version = 11 : i64} {
  func.func @_linear_fullk_kernel(%arg0: i32, %arg1: i32, %arg2: memref<8x32xf32, #tpu.memory_space<vmem>>, %arg3: memref<32x128xf32, #tpu.memory_space<vmem>>, %arg4: memref<1x128xf32, #tpu.memory_space<vmem>>, %arg5: memref<8x128xf32, #tpu.memory_space<vmem>>) attributes {dimension_semantics = [#tpu.dimension_semantics<parallel>, #tpu.dimension_semantics<parallel>], iteration_bounds = array<i64: 1, 1>, scalar_prefetch = 0 : i64, scratch_operands = 0 : i64, tpu.core_type = #tpu.core_type<tc>, window_params = [{transform_indices = @transform_0, window_bounds = array<i64: 8, 32>}, {transform_indices = @transform_1, window_bounds = array<i64: 32, 128>}, {transform_indices = @transform_2, window_bounds = array<i64: 1, 128>}, {transform_indices = @transform_3, window_bounds = array<i64: 8, 128>}]} {
    %c0 = arith.constant 0 : index
    %c0_0 = arith.constant 0 : index
    %0 = vector.load %arg2[%c0, %c0_0] : memref<8x32xf32, #tpu.memory_space<vmem>>, vector<8x32xf32>
    %c0_1 = arith.constant 0 : index
    %c0_2 = arith.constant 0 : index
    %1 = vector.load %arg3[%c0_1, %c0_2] : memref<32x128xf32, #tpu.memory_space<vmem>>, vector<32x128xf32>
    %cst = arith.constant dense<0.000000e+00> : vector<8x128xf32>
    %2 = tpu.matmul %0, %1, %cst {dimension_numbers = #tpu.dot_dimension_numbers<[1], [0], [0], [1], [0, 0, 1, 1], [], []>} : vector<8x32xf32>, vector<32x128xf32>, vector<8x128xf32> -> vector<8x128xf32>
    %c0_3 = arith.constant 0 : index
    %c0_4 = arith.constant 0 : index
    %3 = vector.load %arg4[%c0_3, %c0_4] : memref<1x128xf32, #tpu.memory_space<vmem>>, vector<1x128xf32>
    %4 = vector.broadcast %3 : vector<1x128xf32> to vector<8x128xf32>
    %5 = arith.addf %2, %4 : vector<8x128xf32>
    %c0_5 = arith.constant 0 : index
    %c0_6 = arith.constant 0 : index
    %6 = vector.load %arg5[%c0_5, %c0_6] : memref<8x128xf32, #tpu.memory_space<vmem>>, vector<8x128xf32>
    tpu.vector_store %arg5[%c0_5, %c0_6], %5 {strides = array<i32>} : memref<8x128xf32, #tpu.memory_space<vmem>>, vector<8x128xf32>,
    return
  }
  func.func @transform_0(%arg0: i32, %arg1: i32) -> (i32, i32) {
    %c0_i32 = arith.constant 0 : i32
    %c0_i32_0 = arith.constant 0 : i32
    return %arg0, %c0_i32 : i32, i32
  }
  func.func @transform_1(%arg0: i32, %arg1: i32) -> (i32, i32) {
    %c0_i32 = arith.constant 0 : i32
    %c0_i32_0 = arith.constant 0 : i32
    return %c0_i32, %arg1 : i32, i32
  }
  func.func @transform_2(%arg0: i32, %arg1: i32) -> (i32, i32) {
    %c0_i32 = arith.constant 0 : i32
    %c0_i32_0 = arith.constant 0 : i32
    return %c0_i32, %arg1 : i32, i32
  }
  func.func @transform_3(%arg0: i32, %arg1: i32) -> (i32, i32) {
    %c0_i32 = arith.constant 0 : i32
    return %arg0, %arg1 : i32, i32
  }
}

</mosaic_0001>

<llo_original>
// kernel: logistic_regression_forward.1
$region0: #{logistic_regression_forward.1}
  #allocation0 [shape = 'u32[]', space=smem, size = 0x4, offset = 0x4, fixed_abs, tag = 'smem constant byte address 0x4 - core index']
  #allocation1 [shape = 'u32[144,128]{1,0:T(1,128)}', space=vmem, size = 0x12000, scoped, tag = 'internal scratch']
  %s0 = inlined_call_operand.vmem [shape: f32[8,32], index: 0, kind: input, shape index: {}]
  %s1 = inlined_call_operand.vmem [shape: f32[32,128], index: 1, kind: input, shape index: {}]
  %s2 = inlined_call_operand.vmem [shape: f32[1,128], index: 2, kind: input, shape index: {}]
  %s3 = inlined_call_operand.vmem [shape: f32[8,128], index: 3, kind: output, shape index: {}]
  %s4 = sld [smem:[#allocation0]]
  $region22: #{logistic_regression_forward.1} parent=0
    _
  %s6 = ssub.s32 1, %s4
  %s7 = scalar_select 0, %s6, %s4
  // Predicated region
  $region2: #{logistic_regression_forward.1} parent=0 // pred_check
    _
  $region3: #{logistic_regression_forward.1} parent=0 // pred_check_branch
    %9 = sbr.rel (0) target = $region5
  $region4: #{logistic_regression_forward.1} parent=0 // pred_region
    _
  $region5: #{logistic_regression_forward.1} parent=0 // pred_fallthru
    _
  // Predicated region
  $region6: #{logistic_regression_forward.1} parent=0 // pred_check
    _
  $region7: #{logistic_regression_forward.1} parent=0 // pred_check_branch
    %11 = sbr.rel (0) target = $region9
  $region8: #{logistic_regression_forward.1} parent=0 // pred_region
    _
  $region9: #{logistic_regression_forward.1} parent=0 // pred_fallthru
    _
  // Predicated region
  $region10: #{logistic_regression_forward.1} parent=0 // pred_check
    _
  $region11: #{logistic_regression_forward.1} parent=0 // pred_check_branch
    %13 = sbr.rel (0) target = $region13
  $region12: #{logistic_regression_forward.1} parent=0 // pred_region
    _
  $region13: #{logistic_regression_forward.1} parent=0 // pred_fallthru
    _
  %v14 = vld [vmem:[%s0] sm:$0xff]
  %v15 = vld [vmem:[%s1] sm:$0xff]
  %v16 = vld [vmem:[%s1 + $0x8] sm:$0xff]
  %v17 = vld [vmem:[%s1 + $0x10] sm:$0xff]
  %v18 = vld [vmem:[%s1 + $0x18] sm:$0xff]
  %v19 = vld [vmem:[%s2] sm:$0x1]
  %v21 = vlaneseq
  %v22 = vshrl.u32 %v21, 7
  %v23 = vsub.s32 0, %v22
  %v24 = vrot.slane %v19, %v23
  %vm26 = vcmask 261120
  %v28 = vsel %vm26, %v14, 0
  %30 = vmatprep.subr.mxu0 0.0
  %31 = vmatpush1.msra.mxu0 %v15
  %32 = vmatprep.subr.mxu0 0.0
  %33 = vmatpush1.msra.mxu0 %v16
  %34 = vmatprep.subr.mxu0 0.0
  %35 = vmatpush1.msra.mxu0 %v17
  %36 = vmatprep.subr.mxu0 0.0
  %37 = vmatpush1.msra.mxu0 %v18
  %38 = vmatprep.subr.mxu0 0.0
  %39 = vmatpush1.msra.mxu0 0.0
  %40 = vmatprep.subr.mxu0 0.0
  %41 = vmatpush1.msra.mxu0 0.0
  %42 = vmatprep.subr.mxu0 0.0
  %43 = vmatpush1.msra.mxu0 0.0
  %44 = vmatprep.subr.mxu0 0.0
  %45 = vmatpush1.msra.mxu0 0.0
  %46 = vmatprep.subr.mxu0 0.0
  %47 = vmatpush1.msra.mxu0 0.0
  %48 = vmatprep.subr.mxu0 0.0
  %49 = vmatpush1.msra.mxu0 0.0
  %50 = vmatprep.subr.mxu0 0.0
  %51 = vmatpush1.msra.mxu0 0.0
  %52 = vmatprep.subr.mxu0 0.0
  %53 = vmatpush1.msra.mxu0 0.0
  %54 = vmatprep.subr.mxu0 0.0
  %55 = vmatpush1.msra.mxu0 0.0
  %56 = vmatprep.subr.mxu0 0.0
  %57 = vmatpush1.msra.mxu0 0.0
  %58 = vmatprep.subr.mxu0 0.0
  %59 = vmatpush1.msra.mxu0 0.0
  %60 = vmatprep.subr.mxu0 0.0
  %61 = vmatpush1.msra.mxu0 0.0
  %62 = vmatprep.subr.mxu0 0.0
  %63 = vmatpush1.msra.mxu0 0.0
  %64 = vmatprep.subr.mxu0 0.0
  %65 = vmatpush1.msra.mxu0 0.0
  %66 = vmatprep.subr.mxu0 0.0
  %67 = vmatpush1.msra.mxu0 0.0
  %68 = vmatprep.subr.mxu0 0.0
  %69 = vmatpush1.msra.mxu0 0.0
  %70 = vmatprep.subr.mxu0 0.0
  %71 = vmatpush1.msra.mxu0 0.0
  %72 = vmatprep.subr.mxu0 0.0
  %73 = vmatpush1.msra.mxu0 0.0
  %74 = vmatprep.subr.mxu0 0.0
  %75 = vmatpush1.msra.mxu0 0.0
  %76 = vmatprep.subr.mxu0 0.0
  %77 = vmatpush1.msra.mxu0 0.0
  %78 = vmatprep.subr.mxu0 0.0
  %79 = vmatpush1.msra.mxu0 0.0
  %80 = vmatprep.subr.mxu0 0.0
  %81 = vmatpush1.msra.mxu0 0.0
  %82 = vmatprep.subr.mxu0 0.0
  %83 = vmatpush1.msra.mxu0 0.0
  %84 = vmatprep.subr.mxu0 0.0
  %85 = vmatpush1.msra.mxu0 0.0
  %86 = vmatprep.subr.mxu0 0.0
  %87 = vmatpush1.msra.mxu0 0.0
  %88 = vmatprep.subr.mxu0 0.0
  %89 = vmatpush1.msra.mxu0 0.0
  %90 = vmatprep.subr.mxu0 0.0
  %91 = vmatpush1.msra.mxu0 0.0
  %92 = vmatprep.subr.mxu0 0.0
  %93 = vmatpush1.msra.mxu0 0.0
  %94 = vmatprep.mubr.f32.mxu0 0.0
  %95 = vmatmul.mubr.f32.gmra.mrb[0].mxu0 %v28
  %v96 = vpop.f32.mrb[0].mxu0
  %v97 = vadd.f32 %v24, %v96
  %v98 = vpop.f32.mrb[0].mxu0
  %99 = vdwg.mxu0
  %100 = vst [vmem:[%s3] sm:$0xff] %v97
  // Predicated region
  $region14: #{logistic_regression_forward.1} parent=0 // pred_check
    _
  $region15: #{logistic_regression_forward.1} parent=0 // pred_check_branch
    %102 = sbr.rel (0) target = $region17
  $region16: #{logistic_regression_forward.1} parent=0 // pred_region
    _
  $region17: #{logistic_regression_forward.1} parent=0 // pred_fallthru
    _
  // Predicated region
  $region18: #{logistic_regression_forward.1} parent=0 // pred_check
    _
  $region19: #{logistic_regression_forward.1} parent=0 // pred_check_branch
    %104 = sbr.rel (0) target = $region21
  $region20: #{logistic_regression_forward.1} parent=0 // pred_region
    _
  $region21: #{logistic_regression_forward.1} parent=0 // pred_fallthru
    _

</llo_original>
